<compile_context>
chip_gen: v6e
topology: v6e:2x2x1
jax: 0.10.0
libtpu: 0.0.40
codegen_flags: <defaults>
</compile_context>

<pallas_src>
import jax
import jax.numpy as jnp
import numpy as np
from jax import lax
from jax.experimental import pallas as pl
from jax.experimental.pallas import tpu as pltpu

# ----------------------------- module hyperparams -----------------------------
IN_CHANNELS = 1
NUM_CLASSES = 10
C1_OUT = 32
C2_OUT = 64
KSIZE = 3
FC1_OUT = 128


# ------------------------------- Pallas kernels --------------------------------
def _conv_relu_kernel(p_ref, w_ref, b_ref, o_ref):
    # p_ref: [K, M]  bf16 (im2col patches, columns = N*OH*OW, lane-dense, 128-padded)
    # w_ref: [OC, K] bf16, b_ref: [OC, 1] f32, o_ref: [OC, M] f32
    y = jnp.dot(w_ref[...], p_ref[...], preferred_element_type=jnp.float32)
    o_ref[...] = jnp.maximum(y + b_ref[...], 0.0).astype(o_ref.dtype)


def _conv_relu_pool_kernel(p_ref, w_ref, b_ref, o_ref):
    # Fused conv + bias + ReLU + 2x2 maxpool.
    # p_ref: [4, K, Mp] bf16 -- one im2col patch matrix per pooling offset,
    #                           columns = N*PH*PW pooled output positions.
    # w_ref: [OC, K] bf16, b_ref: [OC, 1] f32, o_ref: [OC, Mp] f32
    w = w_ref[...]
    y = jnp.dot(w, p_ref[0], preferred_element_type=jnp.float32)
    for q in range(1, 4):  # static unroll: elementwise max over the 4 pooling offsets
        y = jnp.maximum(y, jnp.dot(w, p_ref[q], preferred_element_type=jnp.float32))
    # relu(max_q(y_q + b)) == max_q(relu(y_q + b)) since ReLU is monotone; bias is
    # common to all offsets, so add it once after the max.
    o_ref[...] = jnp.maximum(y + b_ref[...], 0.0).astype(o_ref.dtype)


def _mlp_kernel(x_ref, w1_ref, b1_ref, w2_ref, b2_ref, o_ref):
    # x: [N, 9216] f32, w1: [9216, 128] f32, b1: [1, 128] f32,
    # w2: [128, 10] f32, b2: [1, 10] f32, o: [N, 10] f32
    h = jnp.dot(x_ref[...], w1_ref[...], preferred_element_type=jnp.float32) + b1_ref[...]
    h = jnp.maximum(h, 0.0)
    o_ref[...] = (jnp.dot(h, w2_ref[...], preferred_element_type=jnp.float32)
                  + b2_ref[...]).astype(o_ref.dtype)


# ------------------------------ pallas_call wrappers ----------------------------
def _full_spec(shape):
    nd = len(shape)
    return pl.BlockSpec(shape, lambda i, _n=nd: (0,) * _n)


def conv_relu_pallas(patches, w, b):
    k, m = patches.shape
    oc = w.shape[0]
    return pl.pallas_call(
        _conv_relu_kernel,
        out_shape=jax.ShapeDtypeStruct((oc, m), jnp.float32),
        grid_spec=pltpu.PrefetchScalarGridSpec(
            num_scalar_prefetch=0,
            grid=(1,),
            in_specs=[_full_spec((k, m)), _full_spec((oc, k)), _full_spec((oc, 1))],
            out_specs=_full_spec((oc, m)),
        ),
        compiler_params=pltpu.CompilerParams(dimension_semantics=("arbitrary",)),
    )(patches, w, b)


def conv_relu_pool_pallas(patches4, w, b):
    _, k, m = patches4.shape
    oc = w.shape[0]
    return pl.pallas_call(
        _conv_relu_pool_kernel,
        out_shape=jax.ShapeDtypeStruct((oc, m), jnp.float32),
        grid_spec=pltpu.PrefetchScalarGridSpec(
            num_scalar_prefetch=0,
            grid=(1,),
            in_specs=[_full_spec((4, k, m)), _full_spec((oc, k)), _full_spec((oc, 1))],
            out_specs=_full_spec((oc, m)),
        ),
        compiler_params=pltpu.CompilerParams(dimension_semantics=("arbitrary",)),
    )(patches4, w, b)


def mlp_pallas(x, w1t, b1, w2t, b2):
    n, d = x.shape
    h = w1t.shape[1]
    c = w2t.shape[1]
    return pl.pallas_call(
        _mlp_kernel,
        out_shape=jax.ShapeDtypeStruct((n, c), jnp.float32),
        grid_spec=pltpu.PrefetchScalarGridSpec(
            num_scalar_prefetch=0,
            grid=(1,),
            in_specs=[_full_spec((n, d)), _full_spec((d, h)), _full_spec((1, h)),
                      _full_spec((h, c)), _full_spec((1, c))],
            out_specs=_full_spec((n, c)),
        ),
        compiler_params=pltpu.CompilerParams(
            dimension_semantics=("arbitrary",),
            # fc1 weight (f32) dominates VMEM (~4.7 MiB, double-buffered ~9.4 MiB);
            # set the limit explicitly, well under v7x's 64 MiB physical VMEM.
            vmem_limit_bytes=32 * 1024 * 1024),
    )(x, w1t, b1, w2t, b2)


# -------------------------------- JAX-side glue ---------------------------------
def im2col_nhwc(x_nhwc, kh, kw, stride, padding, dilation):
    """Extract patches. Returns ([N, OH, OW, KH*KW*C], OH, OW) with (kh, kw, c) ordering."""
    n, h, w, c = x_nhwc.shape
    xp = jnp.pad(x_nhwc, ((0, 0), (padding, padding), (padding, padding), (0, 0)))
    oh = (h + 2 * padding - dilation * (kh - 1) - 1) // stride + 1
    ow = (w + 2 * padding - dilation * (kw - 1) - 1) // stride + 1
    cols = []
    for i in range(kh):
        for j in range(kw):
            r0 = i * dilation
            c0 = j * dilation
            cols.append(
                xp[:, r0:r0 + (oh - 1) * stride + 1:stride,
                       c0:c0 + (ow - 1) * stride + 1:stride, :])
    return jnp.concatenate(cols, axis=-1), oh, ow


def net_forward(x_nchw, c1_w, c1_b, c2_w, c2_b, f1_w, f1_b, f2_w, f2_b):
    n = x_nchw.shape[0]

    # ---- conv1 + ReLU (lane-dense [OC, M] GEMM) ----
    x_nhwc = jnp.transpose(x_nchw, (0, 2, 3, 1))
    p1, oh1, ow1 = im2col_nhwc(x_nhwc, KSIZE, KSIZE, 1, 0, 1)       # [N, 26, 26, 9]
    m1 = n * oh1 * ow1
    m1p = pl.cdiv(m1, 128) * 128                                    # pad M to 128 lanes
    p1 = p1.reshape(m1, -1).T                                        # [K1, M1]
    p1 = jnp.pad(p1, ((0, 0), (0, m1p - m1))).astype(jnp.bfloat16)   # [K1, M1p] bf16
    w1m = jnp.transpose(c1_w, (0, 2, 3, 1)).reshape(C1_OUT, -1).astype(jnp.bfloat16)
    y1 = conv_relu_pallas(p1, w1m, c1_b.reshape(-1, 1))              # [32, M1p] f32
    a1 = y1[:, :m1].reshape(C1_OUT, n, oh1, ow1).transpose(1, 2, 3, 0)  # NHWC [N,26,26,32]

    # ---- conv2 + ReLU + maxpool(2,2), fused in one kernel ----
    p2f, oh2, ow2 = im2col_nhwc(a1, KSIZE, KSIZE, 1, 0, 1)          # [N, 24, 24, 288]
    ph, pw = oh2 // 2, ow2 // 2
    mp = n * ph * pw
    offs = []
    for dh in range(2):
        for dw in range(2):
            offs.append(p2f[:, dh::2, dw::2, :].reshape(mp, -1).T)   # [288, Mp]
    p2 = jnp.stack(offs, axis=0).astype(jnp.bfloat16)                # [4, 288, Mp]
    w2m = jnp.transpose(c2_w, (0, 2, 3, 1)).reshape(C2_OUT, -1).astype(jnp.bfloat16)
    y2 = conv_relu_pool_pallas(p2, w2m, c2_b.reshape(-1, 1))         # [64, Mp] f32

    # ---- flatten to match PyTorch x.view(N, -1) on NCHW [N, 64, 12, 12] ----
    xf = y2.reshape(C2_OUT, n, ph * pw).transpose(1, 0, 2).reshape(n, -1)  # [N, 9216]

    # ---- fc1 + ReLU + fc2, fused ----
    return mlp_pallas(xf, f1_w.T, f1_b.reshape(1, -1), f2_w.T, f2_b.reshape(1, -1))


# ------------------------------ reference (f32 check) ---------------------------
def reference(x, c1_w, c1_b, c2_w, c2_b, f1_w, f1_b, f2_w, f2_b):
    dn = ("NCHW", "OIHW", "NCHW")
    y = lax.conv_general_dilated(x, c1_w, (1, 1), "VALID", dimension_numbers=dn)
    y = jnp.maximum(y + c1_b.reshape(1, -1, 1, 1), 0.0)
    y = lax.conv_general_dilated(y, c2_w, (1, 1), "VALID", dimension_numbers=dn)
    y = jnp.maximum(y + c2_b.reshape(1, -1, 1, 1), 0.0)
    y = lax.reduce_window(y, -jnp.inf, lax.max, (1, 1, 2, 2), (1, 1, 2, 2), "VALID")
    y = y.reshape(y.shape[0], -1)
    y = jnp.maximum(y @ f1_w.T + f1_b, 0.0)
    return y @ f2_w.T + f2_b


# ------------------------------------- main --------------------------------------
if __name__ == "__main__":
    key = jax.random.PRNGKey(0)
    ks = jax.random.split(key, 9)
    N, H, W = 2, 28, 28   # 28x28 input so 12*12*64 matches fc1, as the module implies

    x = jax.random.normal(ks[0], (N, IN_CHANNELS, H, W), dtype=jnp.float32)

    def _winit(k, shape, fan_in):
        return jax.random.normal(k, shape, dtype=jnp.float32) * float(1.0 / np.sqrt(fan_in))

    conv1_w = _winit(ks[1], (C1_OUT, IN_CHANNELS, KSIZE, KSIZE), IN_CHANNELS * KSIZE * KSIZE)
    conv1_b = 0.1 * jax.random.normal(ks[2], (C1_OUT,), dtype=jnp.float32)
    conv2_w = _winit(ks[3], (C2_OUT, C1_OUT, KSIZE, KSIZE), C1_OUT * KSIZE * KSIZE)
    conv2_b = 0.1 * jax.random.normal(ks[4], (C2_OUT,), dtype=jnp.float32)
    fc1_w = _winit(ks[5], (FC1_OUT, 12 * 12 * C2_OUT), 12 * 12 * C2_OUT)
    fc1_b = 0.1 * jax.random.normal(ks[6], (FC1_OUT,), dtype=jnp.float32)
    fc2_w = _winit(ks[7], (NUM_CLASSES, FC1_OUT), FC1_OUT)
    fc2_b = 0.1 * jax.random.normal(ks[8], (NUM_CLASSES,), dtype=jnp.float32)

    params = (conv1_w, conv1_b, conv2_w, conv2_b, fc1_w, fc1_b, fc2_w, fc2_b)

    out = jax.block_until_ready(net_forward(x, *params))
    ref = jax.block_until_ready(reference(x, *params))

    assert out.shape == ref.shape == (N, NUM_CLASSES)
    # bf16 conv-GEMM operands (per perf review) => slightly looser tolerance vs pure f32.
    diff = float(np.max(np.abs(np.asarray(out) - np.asarray(ref))))
    assert np.allclose(np.asarray(out), np.asarray(ref), atol=5e-2, rtol=5e-2), diff

    print("KERNEL_OK")
</pallas_src>

<mosaic_0001>
module attributes {stable_mosaic.version = 11 : i64} {
  func.func @_conv_relu_kernel(%arg0: i32, %arg1: memref<9x1408xbf16, #tpu.memory_space<vmem>>, %arg2: memref<32x9xbf16, #tpu.memory_space<vmem>>, %arg3: memref<32x1xf32, #tpu.memory_space<vmem>>, %arg4: memref<32x1408xf32, #tpu.memory_space<vmem>>) attributes {dimension_semantics = [#tpu.dimension_semantics<arbitrary>], iteration_bounds = array<i64: 1>, scalar_prefetch = 0 : i64, scratch_operands = 0 : i64, tpu.core_type = #tpu.core_type<tc>, window_params = [{pipeline_mode = #tpu.pipeline_mode<synchronous>, transform_indices = @transform_0, window_bounds = array<i64: 9, 1408>}, {pipeline_mode = #tpu.pipeline_mode<synchronous>, transform_indices = @transform_1, window_bounds = array<i64: 32, 9>}, {pipeline_mode = #tpu.pipeline_mode<synchronous>, transform_indices = @transform_2, window_bounds = array<i64: 32, 1>}, {pipeline_mode = #tpu.pipeline_mode<synchronous>, transform_indices = @transform_3, window_bounds = array<i64: 32, 1408>}]} {
    %c0 = arith.constant 0 : index
    %c0_0 = arith.constant 0 : index
    %0 = vector.load %arg2[%c0, %c0_0] : memref<32x9xbf16, #tpu.memory_space<vmem>>, vector<32x9xbf16>
    %c0_1 = arith.constant 0 : index
    %c0_2 = arith.constant 0 : index
    %1 = vector.load %arg1[%c0_1, %c0_2] : memref<9x1408xbf16, #tpu.memory_space<vmem>>, vector<9x1408xbf16>
    %cst = arith.constant dense<0.000000e+00> : vector<32x1408xf32>
    %2 = tpu.matmul %0, %1, %cst {dimension_numbers = #tpu.dot_dimension_numbers<[1], [0], [0], [1], [0, 0, 1, 1], [], []>} : vector<32x9xbf16>, vector<9x1408xbf16>, vector<32x1408xf32> -> vector<32x1408xf32>
    %c0_3 = arith.constant 0 : index
    %c0_4 = arith.constant 0 : index
    %3 = vector.load %arg3[%c0_3, %c0_4] : memref<32x1xf32, #tpu.memory_space<vmem>>, vector<32x1xf32>
    %4 = vector.broadcast %3 : vector<32x1xf32> to vector<32x1408xf32>
    %5 = arith.addf %2, %4 : vector<32x1408xf32>
    %cst_5 = arith.constant 0.000000e+00 : f32
    %6 = vector.broadcast %cst_5 : f32 to vector<32x1408xf32>
    %7 = arith.maximumf %5, %6 : vector<32x1408xf32>
    %c0_6 = arith.constant 0 : index
    %c0_7 = arith.constant 0 : index
    %8 = vector.load %arg4[%c0_6, %c0_7] : memref<32x1408xf32, #tpu.memory_space<vmem>>, vector<32x1408xf32>
    tpu.vector_store %arg4[%c0_6, %c0_7], %7 {strides = array<i32>} : memref<32x1408xf32, #tpu.memory_space<vmem>>, vector<32x1408xf32>,
    return
  }
  func.func @transform_0(%arg0: i32) -> (i32, i32) {
    %c0_i32 = arith.constant 0 : i32
    %c0_i32_0 = arith.constant 0 : i32
    %c0_i32_1 = arith.constant 0 : i32
    return %c0_i32, %c0_i32_0 : i32, i32
  }
  func.func @transform_1(%arg0: i32) -> (i32, i32) {
    %c0_i32 = arith.constant 0 : i32
    %c0_i32_0 = arith.constant 0 : i32
    %c0_i32_1 = arith.constant 0 : i32
    return %c0_i32, %c0_i32_0 : i32, i32
  }
  func.func @transform_2(%arg0: i32) -> (i32, i32) {
    %c0_i32 = arith.constant 0 : i32
    %c0_i32_0 = arith.constant 0 : i32
    %c0_i32_1 = arith.constant 0 : i32
    return %c0_i32, %c0_i32_0 : i32, i32
  }
  func.func @transform_3(%arg0: i32) -> (i32, i32) {
    %c0_i32 = arith.constant 0 : i32
    %c0_i32_0 = arith.constant 0 : i32
    %c0_i32_1 = arith.constant 0 : i32
    return %c0_i32, %c0_i32_0 : i32, i32
  }
}

</mosaic_0001>

<llo_original>
// kernel: tpu_custom_call.1
$region0: #{tpu_custom_call.1}
  #allocation0 [shape = 'u32[]', space=smem, size = 0x4, offset = 0x4, fixed_abs, tag = 'smem constant byte address 0x4 - core index']
  #allocation1 [shape = 'u32[144,128]{1,0:T(1,128)}', space=vmem, size = 0x12000, scoped, tag = 'internal scratch']
  %s0 = inlined_call_operand.hbm [shape: bf16[9,1408], index: 0, kind: input, shape index: {}]
  %s1 = inlined_call_operand.vmem [shape: bf16[32,9], index: 1, kind: input, shape index: {}]
  %s2 = inlined_call_operand.vmem [shape: f32[32,1], index: 2, kind: input, shape index: {}]
  %s3 = inlined_call_operand.hbm [shape: f32[32,1408], index: 3, kind: output, shape index: {}]
  %s4 = sld [smem:[#allocation0]]
  $region26: #{tpu_custom_call.1} parent=0
    _
  %s6 = ssub.s32 1, %s4
  %s7 = scalar_select 0, %s6, %s4
  $region1: #{tpu_custom_call.1} parent=0
    #allocation2 [shape = 'u8[45056]{0}', space=vmem, size = 0xb000, scoped, tag = 'input window, operand 0, single buffered']
    #allocation3 [shape = 's32[1]{0}', space=sflag, size = 0x4, scoped, tag = 'scoped memory for tpu_custom_call.1']
    #allocation4 [shape = 's32[1]{0}', space=sflag, size = 0x4, scoped, tag = 'scoped memory for tpu_custom_call.1']
    #allocation5 [shape = 'u8[180224]{0}', space=vmem, size = 0x2c000, scoped, tag = 'output window, operand 0, single buffered']
    %8 = vsyncpa [#allocation3], 0
    %9 = vsyncpa [#allocation4], 0
    // Predicated region
    $region2: #{tpu_custom_call.1} parent=1 // pred_check
      _
    $region3: #{tpu_custom_call.1} parent=1 // pred_check_branch
      %11 = sbr.rel (0) target = $region5
    $region4: #{tpu_custom_call.1} parent=1 // pred_region
      %s13 = ssub.s32 1408, 1408
      %14 = vsyncadd [#allocation3], %s13
      %s15 = sshll.u32 [#allocation2], 4
      %s16 = int_to_ptr.vmem [resolvable:$true] %s15
      %21 = dma.hbm_to_vmem [thread:$0]  %s0, 1408, %s16, [#allocation3], 704, 704, 44
    $region5: #{tpu_custom_call.1} parent=1 // pred_fallthru
      _
    // Predicated region
    $region6: #{tpu_custom_call.1} parent=1 // pred_check
      _
    $region7: #{tpu_custom_call.1} parent=1 // pred_check_branch
      %23 = sbr.rel (0) target = $region9
    $region8: #{tpu_custom_call.1} parent=1 // pred_region
      _
    $region9: #{tpu_custom_call.1} parent=1 // pred_fallthru
      _
    // Predicated region
    $region10: #{tpu_custom_call.1} parent=1 // pred_check
      _
    $region11: #{tpu_custom_call.1} parent=1 // pred_check_branch
      %25 = sbr.rel (0) target = $region13
    $region12: #{tpu_custom_call.1} parent=1 // pred_region
      _
    $region13: #{tpu_custom_call.1} parent=1 // pred_fallthru
      _
    // Predicated region
    $region14: #{tpu_custom_call.1} parent=1 // pred_check
      _
    $region15: #{tpu_custom_call.1} parent=1 // pred_check_branch
      %27 = sbr.rel (0) target = $region17
    $region16: #{tpu_custom_call.1} parent=1 // pred_region
      %28 = dma.done [#allocation3], 1408
    $region17: #{tpu_custom_call.1} parent=1 // pred_fallthru
      _
    %v30 = vld [vmem:[%s1] sm:$0xf]
    %v31 = vld [vmem:[%s1 + $0x4] sm:$0xf]
    %v32 = vld [vmem:[%s1 + $0x8] sm:$0xf]
    %v33 = vld [vmem:[%s1 + $0xc] sm:$0xf]
    %v34 = vld [vmem:[#allocation2] sm:$0xff]
    %v35 = vld [vmem:[#allocation2 + $0x8] sm:$0xff]
    %v36 = vld [vmem:[#allocation2 + $0x10] sm:$0xff]
    %v37 = vld [vmem:[#allocation2 + $0x18] sm:$0xff]
    %v38 = vld [vmem:[#allocation2 + $0x20] sm:$0xff]
    %v39 = vld [vmem:[#allocation2 + $0x28] sm:$0xf]
    %v40 = vld [vmem:[#allocation2 + $0x2c] sm:$0x11]
    %v41 = vld [vmem:[#allocation2 + $0x34] sm:$0x11]
    %v42 = vld [vmem:[#allocation2 + $0x3c] sm:$0x11]
    %v43 = vld [vmem:[#allocation2 + $0x44] sm:$0x11]
    %v44 = vld [vmem:[#allocation2 + $0x4c] sm:$0x11]
    %v45 = vld [vmem:[#allocation2 + $0x54] sm:$0x1]
    %v46 = vld [vmem:[%s2] sm:$0xff]
    %v47 = vld [vmem:[%s2 + $0x8] sm:$0xff]
    %v48 = vld [vmem:[%s2 + $0x10] sm:$0xff]
    %v49 = vld [vmem:[%s2 + $0x18] sm:$0xff]
    %51 = vset.pattern.permute.xlu0 0
    %52 = vperm.xlu0 %51, %v46
    %v53 = vpop.permute.xlu0 %52
    %56 = vset.pattern.permute.xlu0 0
    %57 = vperm.xlu0 %56, %v47
    %v58 = vpop.permute.xlu0 %57
    %61 = vset.pattern.permute.xlu0 0
    %62 = vperm.xlu0 %61, %v48
    %v63 = vpop.permute.xlu0 %62
    %66 = vset.pattern.permute.xlu0 0
    %67 = vperm.xlu0 %66, %v49
    %v68 = vpop.permute.xlu0 %67
    %v74 = vunpack.c.l.b16 %v30
    %v75 = vunpack.c.l.b16 %v31
    %v76 = vunpack.c.l.b16 %v32
    %v77 = vunpack.c.l.b16 %v33
    %v78 = vpack.c.b16 %v75, %v74
    %v79 = vpack.c.b16 %v77, %v76
    %v92 = vunpack.c.l.b16 %v34
    %v93 = vunpack.c.h.b16 %v34
    %v94 = vunpack.c.l.b16 %v35
    %v95 = vunpack.c.h.b16 %v35
    %v96 = vunpack.c.l.b16 %v36
    %v97 = vunpack.c.h.b16 %v36
    %v98 = vunpack.c.l.b16 %v37
    %v99 = vunpack.c.h.b16 %v37
    %v100 = vunpack.c.l.b16 %v38
    %v101 = vunpack.c.h.b16 %v38
    %v102 = vunpack.c.l.b16 %v39
    %v103 = vunpack.c.l.b16 %v40
    %v104 = vunpack.c.h.b16 %v40
    %v105 = vunpack.c.l.b16 %v41
    %v106 = vunpack.c.h.b16 %v41
    %v107 = vunpack.c.l.b16 %v42
    %v108 = vunpack.c.h.b16 %v42
    %v109 = vunpack.c.l.b16 %v43
    %v110 = vunpack.c.h.b16 %v43
    %v111 = vunpack.c.l.b16 %v44
    %v112 = vunpack.c.h.b16 %v44
    %v113 = vunpack.c.l.b16 %v45
    %v114 = vpack.c.b16 %v103, %v92
    %v115 = vpack.c.b16 %v104, %v93
    %v116 = vpack.c.b16 %v105, %v94
    %v117 = vpack.c.b16 %v106, %v95
    %v118 = vpack.c.b16 %v107, %v96
    %v119 = vpack.c.b16 %v108, %v97
    %v120 = vpack.c.b16 %v109, %v98
    %v121 = vpack.c.b16 %v110, %v99
    %v122 = vpack.c.b16 %v111, %v100
    %v123 = vpack.c.b16 %v112, %v101
    %v124 = vpack.c.b16 %v113, %v102
    %vm125 = vcmask 72704
    %v127 = vsel %vm125, %v78, 0
    %v130 = vsel %vm125, %v79, 0
    %vm132 = vcmask 1043456
    %vm133 = vcmask 1044480
    %v134 = vsel %vm132, 4294967295, 65535
    %v135 = vsel %vm133, %v134, 0
    %v137 = vand.u32 %v114, %v135
    %v140 = vand.u32 %v115, %v135
    %v143 = vand.u32 %v116, %v135
    %v146 = vand.u32 %v117, %v135
    %v149 = vand.u32 %v118, %v135
    %v152 = vand.u32 %v119, %v135
    %v155 = vand.u32 %v120, %v135
    %v158 = vand.u32 %v121, %v135
    %v161 = vand.u32 %v122, %v135
    %v164 = vand.u32 %v123, %v135
    %v167 = vand.u32 %v124, %v135
    %169 = vmatprep.subr.bf16.mxu0 0
    %170 = vmatpush1.bf16.msra.mxu0 0
    %171 = vmatprep.subr.bf16.mxu0 0
    %172 = vmatpush1.bf16.msra.mxu0 0
    %173 = vmatprep.subr.bf16.mxu0 0
    %174 = vmatpush1.bf16.msra.mxu0 0
    %175 = vmatprep.subr.bf16.mxu0 0
    %176 = vmatpush1.bf16.msra.mxu0 0
    %177 = vmatprep.subr.bf16.mxu0 0
    %178 = vmatpush1.bf16.msra.mxu0 0
    %179 = vmatprep.subr.bf16.mxu0 0
    %180 = vmatpush1.bf16.msra.mxu0 0
    %181 = vmatprep.subr.bf16.mxu0 0
    %182 = vmatpush1.bf16.msra.mxu0 0
    %183 = vmatprep.subr.bf16.mxu0 %v140
    %184 = vmatpush1.bf16.msra.mxu0 %v137
    %185 = vmatprep.subr.bf16.mxu0 0
    %186 = vmatpush2.bf16.msra.mxu0 0
    %187 = vmatprep.subr.bf16.mxu0 0
    %188 = vmatpush2.bf16.msra.mxu0 0
    %189 = vmatprep.subr.bf16.mxu0 0
    %190 = vmatpush2.bf16.msra.mxu0 0
    %191 = vmatprep.subr.bf16.mxu0 0
    %192 = vmatpush2.bf16.msra.mxu0 0
    %193 = vmatprep.subr.bf16.mxu0 0
    %194 = vmatpush2.bf16.msra.mxu0 0
    %195 = vmatprep.subr.bf16.mxu0 0
    %196 = vmatpush2.bf16.msra.mxu0 0
    %197 = vmatprep.subr.bf16.mxu0 0
    %198 = vmatpush2.bf16.msra.mxu0 0
    %199 = vmatprep.subr.bf16.mxu0 0
    %200 = vmatpush2.bf16.msra.mxu0 0
    %201 = vmatprep.mubr.bf16.mxu0 0
    %202 = vmatmul.mubr.bf16.gmra.mxu0 %v127
    %v203 = vpop.f32.mrf.mxu0
    %v204 = vadd.f32 %v53, %v203
    %v205 = vpop.f32.mrf.mxu0
    %v206 = vadd.f32 %v53, %v205
    %v207 = vpop.f32.mrf.mxu0
    %v208 = vadd.f32 %v58, %v207
    %v209 = vpop.f32.mrf.mxu0
    %v210 = vadd.f32 %v58, %v209
    %211 = vmatprep.mubr.bf16.mxu0 0
    %212 = vmatmul.mubr.bf16.gmra.mxu0 %v130
    %v213 = vpop.f32.mrf.mxu0
    %v214 = vadd.f32 %v63, %v213
    %v215 = vpop.f32.mrf.mxu0
    %v216 = vadd.f32 %v63, %v215
    %v217 = vpop.f32.mrf.mxu0
    %v218 = vadd.f32 %v68, %v217
    %v219 = vpop.f32.mrf.mxu0
    %v220 = vadd.f32 %v68, %v219
    %221 = vdwg.mxu0
    %222 = vmatprep.subr.bf16.mxu0 0
    %223 = vmatpush1.bf16.msra.mxu0 0
    %224 = vmatprep.subr.bf16.mxu0 0
    %225 = vmatpush1.bf16.msra.mxu0 0
    %226 = vmatprep.subr.bf16.mxu0 0
    %227 = vmatpush1.bf16.msra.mxu0 0
    %228 = vmatprep.subr.bf16.mxu0 0
    %229 = vmatpush1.bf16.msra.mxu0 0
    %230 = vmatprep.subr.bf16.mxu0 0
    %231 = vmatpush1.bf16.msra.mxu0 0
    %232 = vmatprep.subr.bf16.mxu0 0
    %233 = vmatpush1.bf16.msra.mxu0 0
    %234 = vmatprep.subr.bf16.mxu0 0
    %235 = vmatpush1.bf16.msra.mxu0 0
    %236 = vmatprep.subr.bf16.mxu0 %v146
    %237 = vmatpush1.bf16.msra.mxu0 %v143
    %238 = vmatprep.subr.bf16.mxu0 0
    %239 = vmatpush2.bf16.msra.mxu0 0
    %240 = vmatprep.subr.bf16.mxu0 0
    %241 = vmatpush2.bf16.msra.mxu0 0
    %242 = vmatprep.subr.bf16.mxu0 0
    %243 = vmatpush2.bf16.msra.mxu0 0
    %244 = vmatprep.subr.bf16.mxu0 0
    %245 = vmatpush2.bf16.msra.mxu0 0
    %246 = vmatprep.subr.bf16.mxu0 0
    %247 = vmatpush2.bf16.msra.mxu0 0
    %248 = vmatprep.subr.bf16.mxu0 0
    %249 = vmatpush2.bf16.msra.mxu0 0
    %250 = vmatprep.subr.bf16.mxu0 0
    %251 = vmatpush2.bf16.msra.mxu0 0
    %252 = vmatprep.subr.bf16.mxu0 0
    %253 = vmatpush2.bf16.msra.mxu0 0
    %254 = vmatprep.mubr.bf16.mxu0 0
    %255 = vmatmul.mubr.bf16.gmra.mxu0 %v127
    %v256 = vpop.f32.mrf.mxu0
    %v257 = vadd.f32 %v53, %v256
    %v258 = vpop.f32.mrf.mxu0
    %v259 = vadd.f32 %v53, %v258
    %v260 = vpop.f32.mrf.mxu0
    %v261 = vadd.f32 %v58, %v260
    %v262 = vpop.f32.mrf.mxu0
    %v263 = vadd.f32 %v58, %v262
    %264 = vmatprep.mubr.bf16.mxu0 0
    %265 = vmatmul.mubr.bf16.gmra.mxu0 %v130
    %v266 = vpop.f32.mrf.mxu0
    %v267 = vadd.f32 %v63, %v266
    %v268 = vpop.f32.mrf.mxu0
    %v269 = vadd.f32 %v63, %v268
    %v270 = vpop.f32.mrf.mxu0
    %v271 = vadd.f32 %v68, %v270
    %v272 = vpop.f32.mrf.mxu0
    %v273 = vadd.f32 %v68, %v272
    %274 = vdwg.mxu0
    %275 = vmatprep.subr.bf16.mxu0 0
    %276 = vmatpush1.bf16.msra.mxu0 0
    %277 = vmatprep.subr.bf16.mxu0 0
    %278 = vmatpush1.bf16.msra.mxu0 0
    %279 = vmatprep.subr.bf16.mxu0 0
    %280 = vmatpush1.bf16.msra.mxu0 0
    %281 = vmatprep.subr.bf16.mxu0 0
    %282 = vmatpush1.bf16.msra.mxu0 0
    %283 = vmatprep.subr.bf16.mxu0 0
    %284 = vmatpush1.bf16.msra.mxu0 0
    %285 = vmatprep.subr.bf16.mxu0 0
    %286 = vmatpush1.bf16.msra.mxu0 0
    %287 = vmatprep.subr.bf16.mxu0 0
    %288 = vmatpush1.bf16.msra.mxu0 0
    %289 = vmatprep.subr.bf16.mxu0 %v152
    %290 = vmatpush1.bf16.msra.mxu0 %v149
    %291 = vmatprep.subr.bf16.mxu0 0
    %292 = vmatpush2.bf16.msra.mxu0 0
    %293 = vmatprep.subr.bf16.mxu0 0
    %294 = vmatpush2.bf16.msra.mxu0 0
    %295 = vmatprep.subr.bf16.mxu0 0
    %296 = vmatpush2.bf16.msra.mxu0 0
    %297 = vmatprep.subr.bf16.mxu0 0
    %298 = vmatpush2.bf16.msra.mxu0 0
    %299 = vmatprep.subr.bf16.mxu0 0
    %300 = vmatpush2.bf16.msra.mxu0 0
    %301 = vmatprep.subr.bf16.mxu0 0
    %302 = vmatpush2.bf16.msra.mxu0 0
    %303 = vmatprep.subr.bf16.mxu0 0
    %304 = vmatpush2.bf16.msra.mxu0 0
    %305 = vmatprep.subr.bf16.mxu0 0
    %306 = vmatpush2.bf16.msra.mxu0 0
    %307 = vmatprep.mubr.bf16.mxu0 0
    %308 = vmatmul.mubr.bf16.gmra.mxu0 %v127
    %v309 = vpop.f32.mrf.mxu0
    %v310 = vadd.f32 %v53, %v309
    %v311 = vpop.f32.mrf.mxu0
    %v312 = vadd.f32 %v53, %v311
    %v313 = vpop.f32.mrf.mxu0
    %v314 = vadd.f32 %v58, %v313
    %v315 = vpop.f32.mrf.mxu0
    %v316 = vadd.f32 %v58, %v315
    %317 = vmatprep.mubr.bf16.mxu0 0
    %318 = vmatmul.mubr.bf16.gmra.mxu0 %v130
    %v319 = vpop.f32.mrf.mxu0
    %v320 = vadd.f32 %v63, %v319
    %v321 = vpop.f32.mrf.mxu0
    %v322 = vadd.f32 %v63, %v321
    %v323 = vpop.f32.mrf.mxu0
    %v324 = vadd.f32 %v68, %v323
    %v325 = vpop.f32.mrf.mxu0
    %v326 = vadd.f32 %v68, %v325
    %327 = vdwg.mxu0
    %328 = vmatprep.subr.bf16.mxu0 0
    %329 = vmatpush1.bf16.msra.mxu0 0
    %330 = vmatprep.subr.bf16.mxu0 0
    %331 = vmatpush1.bf16.msra.mxu0 0
    %332 = vmatprep.subr.bf16.mxu0 0
    %333 = vmatpush1.bf16.msra.mxu0 0
    %334 = vmatprep.subr.bf16.mxu0 0
    %335 = vmatpush1.bf16.msra.mxu0 0
    %336 = vmatprep.subr.bf16.mxu0 0
    %337 = vmatpush1.bf16.msra.mxu0 0
    %338 = vmatprep.subr.bf16.mxu0 0
    %339 = vmatpush1.bf16.msra.mxu0 0
    %340 = vmatprep.subr.bf16.mxu0 0
    %341 = vmatpush1.bf16.msra.mxu0 0
    %342 = vmatprep.subr.bf16.mxu0 %v158
    %343 = vmatpush1.bf16.msra.mxu0 %v155
    %344 = vmatprep.subr.bf16.mxu0 0
    %345 = vmatpush2.bf16.msra.mxu0 0
    %346 = vmatprep.subr.bf16.mxu0 0
    %347 = vmatpush2.bf16.msra.mxu0 0
    %348 = vmatprep.subr.bf16.mxu0 0
    %349 = vmatpush2.bf16.msra.mxu0 0
    %350 = vmatprep.subr.bf16.mxu0 0
    %351 = vmatpush2.bf16.msra.mxu0 0
    %352 = vmatprep.subr.bf16.mxu0 0
    %353 = vmatpush2.bf16.msra.mxu0 0
    %354 = vmatprep.subr.bf16.mxu0 0
    %355 = vmatpush2.bf16.msra.mxu0 0
    %356 = vmatprep.subr.bf16.mxu0 0
    %357 = vmatpush2.bf16.msra.mxu0 0
    %358 = vmatprep.subr.bf16.mxu0 0
    %359 = vmatpush2.bf16.msra.mxu0 0
    %360 = vmatprep.mubr.bf16.mxu0 0
    %361 = vmatmul.mubr.bf16.gmra.mxu0 %v127
    %v362 = vpop.f32.mrf.mxu0
    %v363 = vadd.f32 %v53, %v362
    %v364 = vpop.f32.mrf.mxu0
    %v365 = vadd.f32 %v53, %v364
    %v366 = vpop.f32.mrf.mxu0
    %v367 = vadd.f32 %v58, %v366
    %v368 = vpop.f32.mrf.mxu0
    %v369 = vadd.f32 %v58, %v368
    %370 = vmatprep.mubr.bf16.mxu0 0
    %371 = vmatmul.mubr.bf16.gmra.mxu0 %v130
    %v372 = vpop.f32.mrf.mxu0
    %v373 = vadd.f32 %v63, %v372
    %v374 = vpop.f32.mrf.mxu0
    %v375 = vadd.f32 %v63, %v374
    %v376 = vpop.f32.mrf.mxu0
    %v377 = vadd.f32 %v68, %v376
    %v378 = vpop.f32.mrf.mxu0
    %v379 = vadd.f32 %v68, %v378
    %380 = vdwg.mxu0
    %381 = vmatprep.subr.bf16.mxu0 0
    %382 = vmatpush1.bf16.msra.mxu0 0
    %383 = vmatprep.subr.bf16.mxu0 0
    %384 = vmatpush1.bf16.msra.mxu0 0
    %385 = vmatprep.subr.bf16.mxu0 0
    %386 = vmatpush1.bf16.msra.mxu0 0
    %387 = vmatprep.subr.bf16.mxu0 0
    %388 = vmatpush1.bf16.msra.mxu0 0
    %389 = vmatprep.subr.bf16.mxu0 0
    %390 = vmatpush1.bf16.msra.mxu0 0
    %391 = vmatprep.subr.bf16.mxu0 0
    %392 = vmatpush1.bf16.msra.mxu0 0
    %393 = vmatprep.subr.bf16.mxu0 0
    %394 = vmatpush1.bf16.msra.mxu0 0
    %395 = vmatprep.subr.bf16.mxu0 %v164
    %396 = vmatpush1.bf16.msra.mxu0 %v161
    %397 = vmatprep.subr.bf16.mxu0 0
    %398 = vmatpush2.bf16.msra.mxu0 0
    %399 = vmatprep.subr.bf16.mxu0 0
    %400 = vmatpush2.bf16.msra.mxu0 0
    %401 = vmatprep.subr.bf16.mxu0 0
    %402 = vmatpush2.bf16.msra.mxu0 0
    %403 = vmatprep.subr.bf16.mxu0 0
    %404 = vmatpush2.bf16.msra.mxu0 0
    %405 = vmatprep.subr.bf16.mxu0 0
    %406 = vmatpush2.bf16.msra.mxu0 0
    %407 = vmatprep.subr.bf16.mxu0 0
    %408 = vmatpush2.bf16.msra.mxu0 0
    %409 = vmatprep.subr.bf16.mxu0 0
    %410 = vmatpush2.bf16.msra.mxu0 0
    %411 = vmatprep.subr.bf16.mxu0 0
    %412 = vmatpush2.bf16.msra.mxu0 0
    %413 = vmatprep.mubr.bf16.mxu0 0
    %414 = vmatmul.mubr.bf16.gmra.mxu0 %v127
    %v415 = vpop.f32.mrf.mxu0
    %v416 = vadd.f32 %v53, %v415
    %v417 = vpop.f32.mrf.mxu0
    %v418 = vadd.f32 %v53, %v417
    %v419 = vpop.f32.mrf.mxu0
    %v420 = vadd.f32 %v58, %v419
    %v421 = vpop.f32.mrf.mxu0
    %v422 = vadd.f32 %v58, %v421
    %423 = vmatprep.mubr.bf16.mxu0 0
    %424 = vmatmul.mubr.bf16.gmra.mxu0 %v130
    %v425 = vpop.f32.mrf.mxu0
    %v426 = vadd.f32 %v63, %v425
    %v427 = vpop.f32.mrf.mxu0
    %v428 = vadd.f32 %v63, %v427
    %v429 = vpop.f32.mrf.mxu0
    %v430 = vadd.f32 %v68, %v429
    %v431 = vpop.f32.mrf.mxu0
    %v432 = vadd.f32 %v68, %v431
    %433 = vdwg.mxu0
    %434 = vmatprep.subr.bf16.mxu0 0
    %435 = vmatpush1.bf16.msra.mxu0 0
    %436 = vmatprep.subr.bf16.mxu0 0
    %437 = vmatpush1.bf16.msra.mxu0 0
    %438 = vmatprep.subr.bf16.mxu0 0
    %439 = vmatpush1.bf16.msra.mxu0 0
    %440 = vmatprep.subr.bf16.mxu0 0
    %441 = vmatpush1.bf16.msra.mxu0 0
    %442 = vmatprep.subr.bf16.mxu0 0
    %443 = vmatpush1.bf16.msra.mxu0 0
    %444 = vmatprep.subr.bf16.mxu0 0
    %445 = vmatpush1.bf16.msra.mxu0 0
    %446 = vmatprep.subr.bf16.mxu0 0
    %447 = vmatpush1.bf16.msra.mxu0 0
    %448 = vmatprep.subr.bf16.mxu0 0
    %449 = vmatpush1.bf16.msra.mxu0 %v167
    %450 = vmatprep.subr.bf16.mxu0 0
    %451 = vmatpush2.bf16.msra.mxu0 0
    %452 = vmatprep.subr.bf16.mxu0 0
    %453 = vmatpush2.bf16.msra.mxu0 0
    %454 = vmatprep.subr.bf16.mxu0 0
    %455 = vmatpush2.bf16.msra.mxu0 0
    %456 = vmatprep.subr.bf16.mxu0 0
    %457 = vmatpush2.bf16.msra.mxu0 0
    %458 = vmatprep.subr.bf16.mxu0 0
    %459 = vmatpush2.bf16.msra.mxu0 0
    %460 = vmatprep.subr.bf16.mxu0 0
    %461 = vmatpush2.bf16.msra.mxu0 0
    %462 = vmatprep.subr.bf16.mxu0 0
    %463 = vmatpush2.bf16.msra.mxu0 0
    %464 = vmatprep.subr.bf16.mxu0 0
    %465 = vmatpush2.bf16.msra.mxu0 0
    %466 = vmatprep.mubr.bf16.mxu0 0
    %467 = vmatmul.mubr.bf16.gmra.mxu0 %v127
    %v468 = vpop.f32.mrf.mxu0
    %v469 = vadd.f32 %v53, %v468
    %v470 = vpop.f32.mrf.mxu0
    %v471 = vpop.f32.mrf.mxu0
    %v472 = vadd.f32 %v58, %v471
    %v473 = vpop.f32.mrf.mxu0
    %474 = vmatprep.mubr.bf16.mxu0 0
    %475 = vmatmul.mubr.bf16.gmra.mxu0 %v130
    %v476 = vpop.f32.mrf.mxu0
    %v477 = vadd.f32 %v63, %v476
    %v478 = vpop.f32.mrf.mxu0
    %v479 = vpop.f32.mrf.mxu0
    %v480 = vadd.f32 %v68, %v479
    %v481 = vpop.f32.mrf.mxu0
    %482 = vdwg.mxu0
    %v483 = vmax.f32 %v204, 0.0
    %v484 = vmax.f32 %v206, 0.0
    %v485 = vmax.f32 %v257, 0.0
    %v486 = vmax.f32 %v259, 0.0
    %v487 = vmax.f32 %v310, 0.0
    %v488 = vmax.f32 %v312, 0.0
    %v489 = vmax.f32 %v363, 0.0
    %v490 = vmax.f32 %v365, 0.0
    %v491 = vmax.f32 %v416, 0.0
    %v492 = vmax.f32 %v418, 0.0
    %v493 = vmax.f32 %v469, 0.0
    %v494 = vmax.f32 %v208, 0.0
    %v495 = vmax.f32 %v210, 0.0
    %v496 = vmax.f32 %v261, 0.0
    %v497 = vmax.f32 %v263, 0.0
    %v498 = vmax.f32 %v314, 0.0
    %v499 = vmax.f32 %v316, 0.0
    %v500 = vmax.f32 %v367, 0.0
    %v501 = vmax.f32 %v369, 0.0
    %v502 = vmax.f32 %v420, 0.0
    %v503 = vmax.f32 %v422, 0.0
    %v504 = vmax.f32 %v472, 0.0
    %v505 = vmax.f32 %v214, 0.0
    %v506 = vmax.f32 %v216, 0.0
    %v507 = vmax.f32 %v267, 0.0
    %v508 = vmax.f32 %v269, 0.0
    %v509 = vmax.f32 %v320, 0.0
    %v510 = vmax.f32 %v322, 0.0
    %v511 = vmax.f32 %v373, 0.0
    %v512 = vmax.f32 %v375, 0.0
    %v513 = vmax.f32 %v426, 0.0
    %v514 = vmax.f32 %v428, 0.0
    %v515 = vmax.f32 %v477, 0.0
    %v516 = vmax.f32 %v218, 0.0
    %v517 = vmax.f32 %v220, 0.0
    %v518 = vmax.f32 %v271, 0.0
    %v519 = vmax.f32 %v273, 0.0
    %v520 = vmax.f32 %v324, 0.0
    %v521 = vmax.f32 %v326, 0.0
    %v522 = vmax.f32 %v377, 0.0
    %v523 = vmax.f32 %v379, 0.0
    %v524 = vmax.f32 %v430, 0.0
    %v525 = vmax.f32 %v432, 0.0
    %v526 = vmax.f32 %v480, 0.0
    %527 = vst [vmem:[#allocation5] sm:$0xff] %v483
    %528 = vst [vmem:[#allocation5 + $0x8] sm:$0xff] %v484
    %529 = vst [vmem:[#allocation5 + $0x10] sm:$0xff] %v485
    %530 = vst [vmem:[#allocation5 + $0x18] sm:$0xff] %v486
    %531 = vst [vmem:[#allocation5 + $0x20] sm:$0xff] %v487
    %532 = vst [vmem:[#allocation5 + $0x28] sm:$0xff] %v488
    %533 = vst [vmem:[#allocation5 + $0x30] sm:$0xff] %v489
    %534 = vst [vmem:[#allocation5 + $0x38] sm:$0xff] %v490
    %535 = vst [vmem:[#allocation5 + $0x40] sm:$0xff] %v491
    %536 = vst [vmem:[#allocation5 + $0x48] sm:$0xff] %v492
    %537 = vst [vmem:[#allocation5 + $0x50] sm:$0xff] %v493
    %538 = vst [vmem:[#allocation5 + $0x58] sm:$0xff] %v494
    %539 = vst [vmem:[#allocation5 + $0x60] sm:$0xff] %v495
    %540 = vst [vmem:[#allocation5 + $0x68] sm:$0xff] %v496
    %541 = vst [vmem:[#allocation5 + $0x70] sm:$0xff] %v497
    %542 = vst [vmem:[#allocation5 + $0x78] sm:$0xff] %v498
    %543 = vst [vmem:[#allocation5 + $0x80] sm:$0xff] %v499
    %544 = vst [vmem:[#allocation5 + $0x88] sm:$0xff] %v500
    %545 = vst [vmem:[#allocation5 + $0x90] sm:$0xff] %v501
    %546 = vst [vmem:[#allocation5 + $0x98] sm:$0xff] %v502
    %547 = vst [vmem:[#allocation5 + $0xa0] sm:$0xff] %v503
    %548 = vst [vmem:[#allocation5 + $0xa8] sm:$0xff] %v504
    %549 = vst [vmem:[#allocation5 + $0xb0] sm:$0xff] %v505
    %550 = vst [vmem:[#allocation5 + $0xb8] sm:$0xff] %v506
    %551 = vst [vmem:[#allocation5 + $0xc0] sm:$0xff] %v507
    %552 = vst [vmem:[#allocation5 + $0xc8] sm:$0xff] %v508
    %553 = vst [vmem:[#allocation5 + $0xd0] sm:$0xff] %v509
    %554 = vst [vmem:[#allocation5 + $0xd8] sm:$0xff] %v510
    %555 = vst [vmem:[#allocation5 + $0xe0] sm:$0xff] %v511
    %556 = vst [vmem:[#allocation5 + $0xe8] sm:$0xff] %v512
    %557 = vst [vmem:[#allocation5 + $0xf0] sm:$0xff] %v513
    %558 = vst [vmem:[#allocation5 + $0xf8] sm:$0xff] %v514
    %559 = vst [vmem:[#allocation5 + $0x100] sm:$0xff] %v515
    %560 = vst [vmem:[#allocation5 + $0x108] sm:$0xff] %v516
    %561 = vst [vmem:[#allocation5 + $0x110] sm:$0xff] %v517
    %562 = vst [vmem:[#allocation5 + $0x118] sm:$0xff] %v518
    %563 = vst [vmem:[#allocation5 + $0x120] sm:$0xff] %v519
    %564 = vst [vmem:[#allocation5 + $0x128] sm:$0xff] %v520
    %565 = vst [vmem:[#allocation5 + $0x130] sm:$0xff] %v521
    %566 = vst [vmem:[#allocation5 + $0x138] sm:$0xff] %v522
    %567 = vst [vmem:[#allocation5 + $0x140] sm:$0xff] %v523
    %568 = vst [vmem:[#allocation5 + $0x148] sm:$0xff] %v524
    %569 = vst [vmem:[#allocation5 + $0x150] sm:$0xff] %v525
    %570 = vst [vmem:[#allocation5 + $0x158] sm:$0xff] %v526
    // Predicated region
    $region18: #{tpu_custom_call.1} parent=1 // pred_check
      _
    $region19: #{tpu_custom_call.1} parent=1 // pred_check_branch
      %572 = sbr.rel (0) target = $region21
    $region20: #{tpu_custom_call.1} parent=1 // pred_region
      %s574 = ssub.s32 5632, 5632
      %575 = vsyncadd [#allocation4], %s574
      %s576 = sshll.u32 [#allocation5], 4
      %s577 = int_to_ptr.vmem [resolvable:$true] %s576
      %582 = dma.vmem_to_hbm [thread:$0]  %s577, 5632, %s3, [#allocation4], 1408, 1408, 88
    $region21: #{tpu_custom_call.1} parent=1 // pred_fallthru
      _
    // Predicated region
    $region22: #{tpu_custom_call.1} parent=1 // pred_check
      _
    $region23: #{tpu_custom_call.1} parent=1 // pred_check_branch
      %584 = sbr.rel (0) target = $region25
    $region24: #{tpu_custom_call.1} parent=1 // pred_region
      %585 = dma.done [#allocation4], 5632
    $region25: #{tpu_custom_call.1} parent=1 // pred_fallthru
      _
    %586 = vsyncpa [#allocation3], 1
    %587 = vsyncpa [#allocation4], 1

</llo_original>
